<compile_context>
chip_gen: v6e
topology: v6e:2x2x1
jax: 0.10.0
libtpu: 0.0.40
codegen_flags: <defaults>
</compile_context>

<pallas_src>
import jax
import jax.numpy as jnp
from jax.experimental import pallas as pl
from jax.experimental.pallas import tpu as pltpu

IN_F = 1
HID_F = 10
OUT_F = 1
LANE = 128      # points per row (lane axis)
SUBLANE = 8     # sublane alignment for the row axis


def _round_up(a, b):
    return -(-a // b) * b


def _make_kernel(chunk_rows, num_chunks, compute_dtype):
    def kernel(x_ref, w1_ref, b1_ref, w2_ref, b2_ref, o_ref):
        # Hoist all 30 SMEM scalar reads (and their casts) out of the loop.
        w1 = [w1_ref[j].astype(compute_dtype) for j in range(HID_F)]
        b1 = [b1_ref[j].astype(compute_dtype) for j in range(HID_F)]
        w2 = [w2_ref[j].astype(compute_dtype) for j in range(HID_F)]
        b2 = b2_ref[0].astype(compute_dtype)

        def process(r):
            x = x_ref[pl.ds(r, chunk_rows), :].astype(compute_dtype)
            acc = jnp.full_like(x, b2)  # fold b2 into the accumulator init
            # 10 hidden units -> fully unrolled VPU mul/relu/accumulate chain.
            for j in range(HID_F):
                acc = acc + jnp.maximum(x * w1[j] + b1[j], 0) * w2[j]
            o_ref[pl.ds(r, chunk_rows), :] = acc.astype(o_ref.dtype)

        if num_chunks == 1:
            process(0)
        else:
            def body(c, carry):
                process(pl.multiple_of(c * chunk_rows, chunk_rows))
                return carry
            jax.lax.fori_loop(0, num_chunks, body, 0)

    return kernel


def network_forward(x, w1, b1, w2, b2, *, block_rows=4096,
                    compute_dtype=jnp.float32):
    """x: (B, npts, 1) float32.  Returns (B, npts, 1) float32."""
    B, npts, in_f = x.shape
    assert in_f == IN_F
    N = B * npts

    # Lane-dense layout: only pad up to a 128-lane multiple (no block padding;
    # Pallas masks partial edge blocks).
    rows = -(-N // LANE)
    total = rows * LANE

    x_flat = x.reshape(-1).astype(jnp.float32)
    if total != N:
        x_flat = jnp.pad(x_flat, (0, total - N))
    x2d = x_flat.reshape(rows, LANE)

    # Block sizing: large blocks amortize per-grid-step overhead, but keep at
    # least 2 grid steps for non-trivial inputs so both v7x TensorCores are
    # used (grid axis is "parallel"). 4096x128 f32 tiles (in+out, x2 buffers)
    # are ~8 MiB -> well within the default scoped VMEM on every generation.
    block_rows = max(SUBLANE, _round_up(block_rows, SUBLANE))
    if rows <= SUBLANE:
        block_rows = rows                                   # tiny input: 1 block
    else:
        half = _round_up(-(-rows // 2), SUBLANE)            # >=2 grid steps
        block_rows = min(block_rows, half)

    grid = (pl.cdiv(rows, block_rows),)

    # In-kernel row sub-chunk: keeps live vregs small (no spills).
    for c in (32, 16, 8):
        if block_rows % c == 0:
            chunk_rows = c
            break
    else:
        chunk_rows = block_rows
    num_chunks = block_rows // chunk_rows

    # Weights as flat f32 vectors for SMEM (lin1: 1->10, lin2: 10->1).
    w1_v = w1.reshape(HID_F).astype(jnp.float32)
    b1_v = b1.reshape(HID_F).astype(jnp.float32)
    w2_v = w2.reshape(HID_F).astype(jnp.float32)
    b2_v = b2.reshape(OUT_F).astype(jnp.float32)

    smem_spec = pl.BlockSpec(memory_space=pltpu.MemorySpace.SMEM)
    kernel = _make_kernel(chunk_rows, num_chunks, compute_dtype)

    out2d = pl.pallas_call(
        kernel,
        out_shape=jax.ShapeDtypeStruct((rows, LANE), jnp.float32),
        grid_spec=pltpu.PrefetchScalarGridSpec(
            num_scalar_prefetch=0,
            grid=grid,
            in_specs=[
                pl.BlockSpec((block_rows, LANE), lambda i: (i, 0)),  # x tile
                smem_spec,   # w1
                smem_spec,   # b1
                smem_spec,   # w2
                smem_spec,   # b2
            ],
            out_specs=pl.BlockSpec((block_rows, LANE), lambda i: (i, 0)),
        ),
        compiler_params=pltpu.CompilerParams(
            dimension_semantics=("parallel",)
        ),
    )(x2d, w1_v, b1_v, w2_v, b2_v)

    # Padded tail lanes hold relu(b1)@w2 + b2 garbage; trim only when padded.
    if total != N:
        out_flat = out2d.reshape(-1)[:N]
    else:
        out_flat = out2d.reshape(-1)
    return out_flat.reshape(B, npts, OUT_F)


def init_params(key):
    """Deterministic init mirroring nn.Linear's U(-1/sqrt(fan_in), 1/sqrt(fan_in)).
    Weights stored as (in_features, out_features)."""
    k1, k2, k3, k4 = jax.random.split(key, 4)
    bound1 = 1.0 / jnp.sqrt(jnp.float32(IN_F))
    bound2 = 1.0 / jnp.sqrt(jnp.float32(HID_F))
    w1 = jax.random.uniform(k1, (IN_F, HID_F), jnp.float32, -bound1, bound1)
    b1 = jax.random.uniform(k2, (HID_F,), jnp.float32, -bound1, bound1)
    w2 = jax.random.uniform(k3, (HID_F, OUT_F), jnp.float32, -bound2, bound2)
    b2 = jax.random.uniform(k4, (OUT_F,), jnp.float32, -bound2, bound2)
    return w1, b1, w2, b2


if __name__ == "__main__":
    key = jax.random.PRNGKey(0)
    k_in, k_par = jax.random.split(key)

    npts = 1000  # same as the torch example; arbitrary (non-aligned) count
    x = jax.random.uniform(k_in, (1, npts, 1), jnp.float32)  # like torch.rand(1, npts, 1)

    w1, b1, w2, b2 = init_params(k_par)

    y = network_forward(x, w1, b1, w2, b2)
    y = jax.block_until_ready(y)

    # plain-JAX reference check
    ref = jnp.maximum(x.reshape(-1, 1) @ w1 + b1, 0.0) @ w2 + b2
    ref = ref.reshape(1, npts, 1)
    assert y.shape == (1, npts, 1)
    assert jnp.allclose(y, ref, atol=1e-5, rtol=1e-5)

    print("KERNEL_OK")
</pallas_src>

<mosaic_0001>
module attributes {stable_mosaic.version = 11 : i64} {
  func.func @kernel(%arg0: i32, %arg1: memref<8x128xf32, #tpu.memory_space<vmem>>, %arg2: memref<10xf32, #tpu.memory_space<smem>>, %arg3: memref<10xf32, #tpu.memory_space<smem>>, %arg4: memref<10xf32, #tpu.memory_space<smem>>, %arg5: memref<1xf32, #tpu.memory_space<smem>>, %arg6: memref<8x128xf32, #tpu.memory_space<vmem>>) attributes {dimension_semantics = [#tpu.dimension_semantics<parallel>], iteration_bounds = array<i64: 1>, scalar_prefetch = 0 : i64, scratch_operands = 0 : i64, tpu.core_type = #tpu.core_type<tc>, window_params = [{transform_indices = @transform_0, window_bounds = array<i64: 8, 128>}, {transform_indices = @transform_1, window_bounds = array<i64: 10>}, {transform_indices = @transform_2, window_bounds = array<i64: 10>}, {transform_indices = @transform_3, window_bounds = array<i64: 10>}, {transform_indices = @transform_4, window_bounds = array<i64: 1>}, {transform_indices = @transform_5, window_bounds = array<i64: 8, 128>}]} {
    %c0 = arith.constant 0 : index
    %0 = memref.load %arg2[%c0] : memref<10xf32, #tpu.memory_space<smem>>
    %c1 = arith.constant 1 : index
    %1 = memref.load %arg2[%c1] : memref<10xf32, #tpu.memory_space<smem>>
    %c2 = arith.constant 2 : index
    %2 = memref.load %arg2[%c2] : memref<10xf32, #tpu.memory_space<smem>>
    %c3 = arith.constant 3 : index
    %3 = memref.load %arg2[%c3] : memref<10xf32, #tpu.memory_space<smem>>
    %c4 = arith.constant 4 : index
    %4 = memref.load %arg2[%c4] : memref<10xf32, #tpu.memory_space<smem>>
    %c5 = arith.constant 5 : index
    %5 = memref.load %arg2[%c5] : memref<10xf32, #tpu.memory_space<smem>>
    %c6 = arith.constant 6 : index
    %6 = memref.load %arg2[%c6] : memref<10xf32, #tpu.memory_space<smem>>
    %c7 = arith.constant 7 : index
    %7 = memref.load %arg2[%c7] : memref<10xf32, #tpu.memory_space<smem>>
    %c8 = arith.constant 8 : index
    %8 = memref.load %arg2[%c8] : memref<10xf32, #tpu.memory_space<smem>>
    %c9 = arith.constant 9 : index
    %9 = memref.load %arg2[%c9] : memref<10xf32, #tpu.memory_space<smem>>
    %c0_0 = arith.constant 0 : index
    %10 = memref.load %arg3[%c0_0] : memref<10xf32, #tpu.memory_space<smem>>
    %c1_1 = arith.constant 1 : index
    %11 = memref.load %arg3[%c1_1] : memref<10xf32, #tpu.memory_space<smem>>
    %c2_2 = arith.constant 2 : index
    %12 = memref.load %arg3[%c2_2] : memref<10xf32, #tpu.memory_space<smem>>
    %c3_3 = arith.constant 3 : index
    %13 = memref.load %arg3[%c3_3] : memref<10xf32, #tpu.memory_space<smem>>
    %c4_4 = arith.constant 4 : index
    %14 = memref.load %arg3[%c4_4] : memref<10xf32, #tpu.memory_space<smem>>
    %c5_5 = arith.constant 5 : index
    %15 = memref.load %arg3[%c5_5] : memref<10xf32, #tpu.memory_space<smem>>
    %c6_6 = arith.constant 6 : index
    %16 = memref.load %arg3[%c6_6] : memref<10xf32, #tpu.memory_space<smem>>
    %c7_7 = arith.constant 7 : index
    %17 = memref.load %arg3[%c7_7] : memref<10xf32, #tpu.memory_space<smem>>
    %c8_8 = arith.constant 8 : index
    %18 = memref.load %arg3[%c8_8] : memref<10xf32, #tpu.memory_space<smem>>
    %c9_9 = arith.constant 9 : index
    %19 = memref.load %arg3[%c9_9] : memref<10xf32, #tpu.memory_space<smem>>
    %c0_10 = arith.constant 0 : index
    %20 = memref.load %arg4[%c0_10] : memref<10xf32, #tpu.memory_space<smem>>
    %c1_11 = arith.constant 1 : index
    %21 = memref.load %arg4[%c1_11] : memref<10xf32, #tpu.memory_space<smem>>
    %c2_12 = arith.constant 2 : index
    %22 = memref.load %arg4[%c2_12] : memref<10xf32, #tpu.memory_space<smem>>
    %c3_13 = arith.constant 3 : index
    %23 = memref.load %arg4[%c3_13] : memref<10xf32, #tpu.memory_space<smem>>
    %c4_14 = arith.constant 4 : index
    %24 = memref.load %arg4[%c4_14] : memref<10xf32, #tpu.memory_space<smem>>
    %c5_15 = arith.constant 5 : index
    %25 = memref.load %arg4[%c5_15] : memref<10xf32, #tpu.memory_space<smem>>
    %c6_16 = arith.constant 6 : index
    %26 = memref.load %arg4[%c6_16] : memref<10xf32, #tpu.memory_space<smem>>
    %c7_17 = arith.constant 7 : index
    %27 = memref.load %arg4[%c7_17] : memref<10xf32, #tpu.memory_space<smem>>
    %c8_18 = arith.constant 8 : index
    %28 = memref.load %arg4[%c8_18] : memref<10xf32, #tpu.memory_space<smem>>
    %c9_19 = arith.constant 9 : index
    %29 = memref.load %arg4[%c9_19] : memref<10xf32, #tpu.memory_space<smem>>
    %c0_20 = arith.constant 0 : index
    %30 = memref.load %arg5[%c0_20] : memref<1xf32, #tpu.memory_space<smem>>
    %c0_21 = arith.constant 0 : index
    %c0_22 = arith.constant 0 : index
    %31 = vector.load %arg1[%c0_21, %c0_22] : memref<8x128xf32, #tpu.memory_space<vmem>>, vector<8x128xf32>
    %32 = vector.broadcast %30 : f32 to vector<8x128xf32>
    %33 = vector.broadcast %0 : f32 to vector<8x128xf32>
    %34 = arith.mulf %31, %33 : vector<8x128xf32>
    %35 = vector.broadcast %10 : f32 to vector<8x128xf32>
    %36 = arith.addf %34, %35 : vector<8x128xf32>
    %cst = arith.constant 0.000000e+00 : f32
    %37 = vector.broadcast %cst : f32 to vector<8x128xf32>
    %38 = arith.maximumf %36, %37 : vector<8x128xf32>
    %39 = vector.broadcast %20 : f32 to vector<8x128xf32>
    %40 = arith.mulf %38, %39 : vector<8x128xf32>
    %41 = arith.addf %32, %40 : vector<8x128xf32>
    %42 = vector.broadcast %1 : f32 to vector<8x128xf32>
    %43 = arith.mulf %31, %42 : vector<8x128xf32>
    %44 = vector.broadcast %11 : f32 to vector<8x128xf32>
    %45 = arith.addf %43, %44 : vector<8x128xf32>
    %cst_23 = arith.constant 0.000000e+00 : f32
    %46 = vector.broadcast %cst_23 : f32 to vector<8x128xf32>
    %47 = arith.maximumf %45, %46 : vector<8x128xf32>
    %48 = vector.broadcast %21 : f32 to vector<8x128xf32>
    %49 = arith.mulf %47, %48 : vector<8x128xf32>
    %50 = arith.addf %41, %49 : vector<8x128xf32>
    %51 = vector.broadcast %2 : f32 to vector<8x128xf32>
    %52 = arith.mulf %31, %51 : vector<8x128xf32>
    %53 = vector.broadcast %12 : f32 to vector<8x128xf32>
    %54 = arith.addf %52, %53 : vector<8x128xf32>
    %cst_24 = arith.constant 0.000000e+00 : f32
    %55 = vector.broadcast %cst_24 : f32 to vector<8x128xf32>
    %56 = arith.maximumf %54, %55 : vector<8x128xf32>
    %57 = vector.broadcast %22 : f32 to vector<8x128xf32>
    %58 = arith.mulf %56, %57 : vector<8x128xf32>
    %59 = arith.addf %50, %58 : vector<8x128xf32>
    %60 = vector.broadcast %3 : f32 to vector<8x128xf32>
    %61 = arith.mulf %31, %60 : vector<8x128xf32>
    %62 = vector.broadcast %13 : f32 to vector<8x128xf32>
    %63 = arith.addf %61, %62 : vector<8x128xf32>
    %cst_25 = arith.constant 0.000000e+00 : f32
    %64 = vector.broadcast %cst_25 : f32 to vector<8x128xf32>
    %65 = arith.maximumf %63, %64 : vector<8x128xf32>
    %66 = vector.broadcast %23 : f32 to vector<8x128xf32>
    %67 = arith.mulf %65, %66 : vector<8x128xf32>
    %68 = arith.addf %59, %67 : vector<8x128xf32>
    %69 = vector.broadcast %4 : f32 to vector<8x128xf32>
    %70 = arith.mulf %31, %69 : vector<8x128xf32>
    %71 = vector.broadcast %14 : f32 to vector<8x128xf32>
    %72 = arith.addf %70, %71 : vector<8x128xf32>
    %cst_26 = arith.constant 0.000000e+00 : f32
    %73 = vector.broadcast %cst_26 : f32 to vector<8x128xf32>
    %74 = arith.maximumf %72, %73 : vector<8x128xf32>
    %75 = vector.broadcast %24 : f32 to vector<8x128xf32>
    %76 = arith.mulf %74, %75 : vector<8x128xf32>
    %77 = arith.addf %68, %76 : vector<8x128xf32>
    %78 = vector.broadcast %5 : f32 to vector<8x128xf32>
    %79 = arith.mulf %31, %78 : vector<8x128xf32>
    %80 = vector.broadcast %15 : f32 to vector<8x128xf32>
    %81 = arith.addf %79, %80 : vector<8x128xf32>
    %cst_27 = arith.constant 0.000000e+00 : f32
    %82 = vector.broadcast %cst_27 : f32 to vector<8x128xf32>
    %83 = arith.maximumf %81, %82 : vector<8x128xf32>
    %84 = vector.broadcast %25 : f32 to vector<8x128xf32>
    %85 = arith.mulf %83, %84 : vector<8x128xf32>
    %86 = arith.addf %77, %85 : vector<8x128xf32>
    %87 = vector.broadcast %6 : f32 to vector<8x128xf32>
    %88 = arith.mulf %31, %87 : vector<8x128xf32>
    %89 = vector.broadcast %16 : f32 to vector<8x128xf32>
    %90 = arith.addf %88, %89 : vector<8x128xf32>
    %cst_28 = arith.constant 0.000000e+00 : f32
    %91 = vector.broadcast %cst_28 : f32 to vector<8x128xf32>
    %92 = arith.maximumf %90, %91 : vector<8x128xf32>
    %93 = vector.broadcast %26 : f32 to vector<8x128xf32>
    %94 = arith.mulf %92, %93 : vector<8x128xf32>
    %95 = arith.addf %86, %94 : vector<8x128xf32>
    %96 = vector.broadcast %7 : f32 to vector<8x128xf32>
    %97 = arith.mulf %31, %96 : vector<8x128xf32>
    %98 = vector.broadcast %17 : f32 to vector<8x128xf32>
    %99 = arith.addf %97, %98 : vector<8x128xf32>
    %cst_29 = arith.constant 0.000000e+00 : f32
    %100 = vector.broadcast %cst_29 : f32 to vector<8x128xf32>
    %101 = arith.maximumf %99, %100 : vector<8x128xf32>
    %102 = vector.broadcast %27 : f32 to vector<8x128xf32>
    %103 = arith.mulf %101, %102 : vector<8x128xf32>
    %104 = arith.addf %95, %103 : vector<8x128xf32>
    %105 = vector.broadcast %8 : f32 to vector<8x128xf32>
    %106 = arith.mulf %31, %105 : vector<8x128xf32>
    %107 = vector.broadcast %18 : f32 to vector<8x128xf32>
    %108 = arith.addf %106, %107 : vector<8x128xf32>
    %cst_30 = arith.constant 0.000000e+00 : f32
    %109 = vector.broadcast %cst_30 : f32 to vector<8x128xf32>
    %110 = arith.maximumf %108, %109 : vector<8x128xf32>
    %111 = vector.broadcast %28 : f32 to vector<8x128xf32>
    %112 = arith.mulf %110, %111 : vector<8x128xf32>
    %113 = arith.addf %104, %112 : vector<8x128xf32>
    %114 = vector.broadcast %9 : f32 to vector<8x128xf32>
    %115 = arith.mulf %31, %114 : vector<8x128xf32>
    %116 = vector.broadcast %19 : f32 to vector<8x128xf32>
    %117 = arith.addf %115, %116 : vector<8x128xf32>
    %cst_31 = arith.constant 0.000000e+00 : f32
    %118 = vector.broadcast %cst_31 : f32 to vector<8x128xf32>
    %119 = arith.maximumf %117, %118 : vector<8x128xf32>
    %120 = vector.broadcast %29 : f32 to vector<8x128xf32>
    %121 = arith.mulf %119, %120 : vector<8x128xf32>
    %122 = arith.addf %113, %121 : vector<8x128xf32>
    %c0_32 = arith.constant 0 : index
    %c0_33 = arith.constant 0 : index
    %123 = vector.load %arg6[%c0_32, %c0_33] : memref<8x128xf32, #tpu.memory_space<vmem>>, vector<8x128xf32>
    tpu.vector_store %arg6[%c0_32, %c0_33], %122 {strides = array<i32>} : memref<8x128xf32, #tpu.memory_space<vmem>>, vector<8x128xf32>,
    return
  }
  func.func @transform_0(%arg0: i32) -> (i32, i32) {
    %c0_i32 = arith.constant 0 : i32
    %c0_i32_0 = arith.constant 0 : i32
    return %arg0, %c0_i32 : i32, i32
  }
  func.func @transform_1(%arg0: i32) -> i32 {
    %c0_i32 = arith.constant 0 : i32
    %c0_i32_0 = arith.constant 0 : i32
    return %c0_i32 : i32
  }
  func.func @transform_2(%arg0: i32) -> i32 {
    %c0_i32 = arith.constant 0 : i32
    %c0_i32_0 = arith.constant 0 : i32
    return %c0_i32 : i32
  }
  func.func @transform_3(%arg0: i32) -> i32 {
    %c0_i32 = arith.constant 0 : i32
    %c0_i32_0 = arith.constant 0 : i32
    return %c0_i32 : i32
  }
  func.func @transform_4(%arg0: i32) -> i32 {
    %c0_i32 = arith.constant 0 : i32
    %c0_i32_0 = arith.constant 0 : i32
    return %c0_i32 : i32
  }
  func.func @transform_5(%arg0: i32) -> (i32, i32) {
    %c0_i32 = arith.constant 0 : i32
    %c0_i32_0 = arith.constant 0 : i32
    return %arg0, %c0_i32 : i32, i32
  }
}

</mosaic_0001>

<llo_original>
// kernel: tpu_custom_call.1
$region0: #{tpu_custom_call.1}
  #allocation0 [shape = 'u32[]', space=smem, size = 0x4, offset = 0x4, fixed_abs, tag = 'smem constant byte address 0x4 - core index']
  #allocation1 [shape = 'u32[144,128]{1,0:T(1,128)}', space=vmem, size = 0x12000, scoped, tag = 'internal scratch']
  #allocation2 [shape = 'f32[1]{0:T(128)S(6)}', space=smem, size = 0x200, scoped, tag = 'scoped memory for tpu_custom_call.1']
  %s0 = inlined_call_operand.hbm [shape: f32[8,128], index: 0, kind: input, shape index: {}]
  %s1 = inlined_call_operand.vmem [shape: f32[10], index: 1, kind: input, shape index: {}]
  %s2 = inlined_call_operand.vmem [shape: f32[10], index: 2, kind: input, shape index: {}]
  %s3 = inlined_call_operand.vmem [shape: f32[10], index: 3, kind: input, shape index: {}]
  %s4 = inlined_call_operand.<no memory space> [shape: f32[1], index: 4, kind: input, shape index: {}]
  %s5 = inlined_call_operand.hbm [shape: f32[8,128], index: 5, kind: output, shape index: {}]
  %s6 = sld [smem:[#allocation0]]
  $region46: #{tpu_custom_call.1} parent=0
    _
  %s8 = ssub.s32 1, %s6
  %s9 = scalar_select 0, %s8, %s6
  %10 = sst [smem:[#allocation2]] %s4
  $region1: #{tpu_custom_call.1} parent=0
    #allocation3 [shape = 'u8[4096]{0}', space=vmem, size = 0x1000, scoped, tag = 'input window, operand 0, single buffered']
    #allocation4 [shape = 's32[1]{0}', space=sflag, size = 0x4, scoped, tag = 'scoped memory for tpu_custom_call.1']
    #allocation5 [shape = 's32[1]{0}', space=sflag, size = 0x4, scoped, tag = 'scoped memory for tpu_custom_call.1']
    #allocation6 [shape = 's32[1]{0}', space=sflag, size = 0x4, scoped, tag = 'scoped memory for tpu_custom_call.1']
    #allocation7 [shape = 'u8[512]{0}', space=smem, size = 0x200, scoped, tag = 'input window, operand 1, single buffered']
    #allocation8 [shape = 'u8[512]{0}', space=smem, size = 0x200, scoped, tag = 'input window, operand 2, single buffered']
    #allocation9 [shape = 's32[1]{0}', space=sflag, size = 0x4, scoped, tag = 'scoped memory for tpu_custom_call.1']
    #allocation10 [shape = 'u8[512]{0}', space=smem, size = 0x200, scoped, tag = 'input window, operand 3, single buffered']
    #allocation11 [shape = 'u8[4096]{0}', space=vmem, size = 0x1000, scoped, tag = 'output window, operand 0, single buffered']
    %11 = vsyncpa [#allocation4], 0
    %12 = vsyncpa [#allocation6], 0
    %13 = vsyncpa [#allocation9], 0
    %14 = vsyncpa [#allocation5], 0
    // Predicated region
    $region2: #{tpu_custom_call.1} parent=1 // pred_check
      _
    $region3: #{tpu_custom_call.1} parent=1 // pred_check_branch
      %16 = sbr.rel (0) target = $region5
    $region4: #{tpu_custom_call.1} parent=1 // pred_region
      %s18 = ssub.s32 128, 128
      %19 = vsyncadd [#allocation4], %s18
      %s21 = sshll.u32 [#allocation3], 4
      %s22 = int_to_ptr.vmem [resolvable:$true] %s21
      %24 = dma.hbm_to_vmem [thread:$0]  %s0, 128, %s22, [#allocation4]
    $region5: #{tpu_custom_call.1} parent=1 // pred_fallthru
      _
    // Predicated region
    $region6: #{tpu_custom_call.1} parent=1 // pred_check
      _
    $region7: #{tpu_custom_call.1} parent=1 // pred_check_branch
      %26 = sbr.rel (0) target = $region9
    $region8: #{tpu_custom_call.1} parent=1 // pred_region
      %s28 = ssub.s32 16, 16
      %29 = vsyncadd [#allocation6], %s28
      %s31 = sshll.u32 %s1, 4
      %s32 = int_to_ptr.vmem [resolvable:$true] %s31
      %34 = dma.vmem_to_smem %s32, 16, [#allocation7], [#allocation6]
    $region9: #{tpu_custom_call.1} parent=1 // pred_fallthru
      _
    // Predicated region
    $region10: #{tpu_custom_call.1} parent=1 // pred_check
      _
    $region11: #{tpu_custom_call.1} parent=1 // pred_check_branch
      %36 = sbr.rel (0) target = $region13
    $region12: #{tpu_custom_call.1} parent=1 // pred_region
      %s38 = ssub.s32 16, 16
      %39 = vsyncadd [#allocation9], %s38
      %s41 = sshll.u32 %s2, 4
      %s42 = int_to_ptr.vmem [resolvable:$true] %s41
      %44 = dma.vmem_to_smem %s42, 16, [#allocation8], [#allocation9]
    $region13: #{tpu_custom_call.1} parent=1 // pred_fallthru
      _
    // Predicated region
    $region14: #{tpu_custom_call.1} parent=1 // pred_check
      _
    $region15: #{tpu_custom_call.1} parent=1 // pred_check_branch
      %46 = sbr.rel (0) target = $region17
    $region16: #{tpu_custom_call.1} parent=1 // pred_region
      %s48 = ssub.s32 16, 16
      %49 = vsyncadd [#allocation9], %s48
      %s51 = sshll.u32 %s3, 4
      %s52 = int_to_ptr.vmem [resolvable:$true] %s51
      %54 = dma.vmem_to_smem %s52, 16, [#allocation10], [#allocation9]
    $region17: #{tpu_custom_call.1} parent=1 // pred_fallthru
      _
    // Predicated region
    $region18: #{tpu_custom_call.1} parent=1 // pred_check
      _
    $region19: #{tpu_custom_call.1} parent=1 // pred_check_branch
      %56 = sbr.rel (0) target = $region21
    $region20: #{tpu_custom_call.1} parent=1 // pred_region
      _
    $region21: #{tpu_custom_call.1} parent=1 // pred_fallthru
      _
    // Predicated region
    $region22: #{tpu_custom_call.1} parent=1 // pred_check
      _
    $region23: #{tpu_custom_call.1} parent=1 // pred_check_branch
      %58 = sbr.rel (0) target = $region25
    $region24: #{tpu_custom_call.1} parent=1 // pred_region
      %59 = dma.done [#allocation4], 128
    $region25: #{tpu_custom_call.1} parent=1 // pred_fallthru
      _
    // Predicated region
    $region26: #{tpu_custom_call.1} parent=1 // pred_check
      _
    $region27: #{tpu_custom_call.1} parent=1 // pred_check_branch
      %61 = sbr.rel (0) target = $region29
    $region28: #{tpu_custom_call.1} parent=1 // pred_region
      %62 = dma.done [#allocation6], 16
    $region29: #{tpu_custom_call.1} parent=1 // pred_fallthru
      _
    // Predicated region
    $region30: #{tpu_custom_call.1} parent=1 // pred_check
      _
    $region31: #{tpu_custom_call.1} parent=1 // pred_check_branch
      %64 = sbr.rel (0) target = $region33
    $region32: #{tpu_custom_call.1} parent=1 // pred_region
      %65 = dma.done [#allocation9], 16
    $region33: #{tpu_custom_call.1} parent=1 // pred_fallthru
      _
    // Predicated region
    $region34: #{tpu_custom_call.1} parent=1 // pred_check
      _
    $region35: #{tpu_custom_call.1} parent=1 // pred_check_branch
      %67 = sbr.rel (0) target = $region37
    $region36: #{tpu_custom_call.1} parent=1 // pred_region
      %68 = dma.done [#allocation9], 16
    $region37: #{tpu_custom_call.1} parent=1 // pred_fallthru
      _
    %69 = sfence
    %s70 = sld [smem:[#allocation7]]
    %s71 = sld [smem:[#allocation7 + $0x1]]
    %s72 = sld [smem:[#allocation7 + $0x2]]
    %s73 = sld [smem:[#allocation7 + $0x3]]
    %s74 = sld [smem:[#allocation7 + $0x4]]
    %s75 = sld [smem:[#allocation7 + $0x5]]
    %s76 = sld [smem:[#allocation7 + $0x6]]
    %s77 = sld [smem:[#allocation7 + $0x7]]
    %s78 = sld [smem:[#allocation7 + $0x8]]
    %s79 = sld [smem:[#allocation7 + $0x9]]
    %s80 = sld [smem:[#allocation8]]
    %s81 = sld [smem:[#allocation8 + $0x1]]
    %s82 = sld [smem:[#allocation8 + $0x2]]
    %s83 = sld [smem:[#allocation8 + $0x3]]
    %s84 = sld [smem:[#allocation8 + $0x4]]
    %s85 = sld [smem:[#allocation8 + $0x5]]
    %s86 = sld [smem:[#allocation8 + $0x6]]
    %s87 = sld [smem:[#allocation8 + $0x7]]
    %s88 = sld [smem:[#allocation8 + $0x8]]
    %s89 = sld [smem:[#allocation8 + $0x9]]
    %s90 = sld [smem:[#allocation10]]
    %s91 = sld [smem:[#allocation10 + $0x1]]
    %s92 = sld [smem:[#allocation10 + $0x2]]
    %s93 = sld [smem:[#allocation10 + $0x3]]
    %s94 = sld [smem:[#allocation10 + $0x4]]
    %s95 = sld [smem:[#allocation10 + $0x5]]
    %s96 = sld [smem:[#allocation10 + $0x6]]
    %s97 = sld [smem:[#allocation10 + $0x7]]
    %s98 = sld [smem:[#allocation10 + $0x8]]
    %s99 = sld [smem:[#allocation10 + $0x9]]
    %s100 = sld [smem:[#allocation2]]
    %v101 = vld [vmem:[#allocation3] sm:$0xff]
    %v102 = vstv %s100
    %v103 = vstv %s70
    %v104 = vmul.f32 %v101, %v103
    %v105 = vstv %s80
    %v106 = vadd.f32 %v104, %v105
    %v107 = vmax.f32 %v106, 0.0
    %v108 = vstv %s90
    %v109 = vmul.f32 %v107, %v108
    %v110 = vadd.f32 %v102, %v109
    %v111 = vstv %s71
    %v112 = vmul.f32 %v101, %v111
    %v113 = vstv %s81
    %v114 = vadd.f32 %v112, %v113
    %v115 = vmax.f32 %v114, 0.0
    %v116 = vstv %s91
    %v117 = vmul.f32 %v115, %v116
    %v118 = vadd.f32 %v110, %v117
    %v119 = vstv %s72
    %v120 = vmul.f32 %v101, %v119
    %v121 = vstv %s82
    %v122 = vadd.f32 %v120, %v121
    %v123 = vmax.f32 %v122, 0.0
    %v124 = vstv %s92
    %v125 = vmul.f32 %v123, %v124
    %v126 = vadd.f32 %v118, %v125
    %v127 = vstv %s73
    %v128 = vmul.f32 %v101, %v127
    %v129 = vstv %s83
    %v130 = vadd.f32 %v128, %v129
    %v131 = vmax.f32 %v130, 0.0
    %v132 = vstv %s93
    %v133 = vmul.f32 %v131, %v132
    %v134 = vadd.f32 %v126, %v133
    %v135 = vstv %s74
    %v136 = vmul.f32 %v101, %v135
    %v137 = vstv %s84
    %v138 = vadd.f32 %v136, %v137
    %v139 = vmax.f32 %v138, 0.0
    %v140 = vstv %s94
    %v141 = vmul.f32 %v139, %v140
    %v142 = vadd.f32 %v134, %v141
    %v143 = vstv %s75
    %v144 = vmul.f32 %v101, %v143
    %v145 = vstv %s85
    %v146 = vadd.f32 %v144, %v145
    %v147 = vmax.f32 %v146, 0.0
    %v148 = vstv %s95
    %v149 = vmul.f32 %v147, %v148
    %v150 = vadd.f32 %v142, %v149
    %v151 = vstv %s76
    %v152 = vmul.f32 %v101, %v151
    %v153 = vstv %s86
    %v154 = vadd.f32 %v152, %v153
    %v155 = vmax.f32 %v154, 0.0
    %v156 = vstv %s96
    %v157 = vmul.f32 %v155, %v156
    %v158 = vadd.f32 %v150, %v157
    %v159 = vstv %s77
    %v160 = vmul.f32 %v101, %v159
    %v161 = vstv %s87
    %v162 = vadd.f32 %v160, %v161
    %v163 = vmax.f32 %v162, 0.0
    %v164 = vstv %s97
    %v165 = vmul.f32 %v163, %v164
    %v166 = vadd.f32 %v158, %v165
    %v167 = vstv %s78
    %v168 = vmul.f32 %v101, %v167
    %v169 = vstv %s88
    %v170 = vadd.f32 %v168, %v169
    %v171 = vmax.f32 %v170, 0.0
    %v172 = vstv %s98
    %v173 = vmul.f32 %v171, %v172
    %v174 = vadd.f32 %v166, %v173
    %v175 = vstv %s79
    %v176 = vmul.f32 %v101, %v175
    %v177 = vstv %s89
    %v178 = vadd.f32 %v176, %v177
    %v179 = vmax.f32 %v178, 0.0
    %v180 = vstv %s99
    %v181 = vmul.f32 %v179, %v180
    %v182 = vadd.f32 %v174, %v181
    %183 = vst [vmem:[#allocation11] sm:$0xff] %v182
    // Predicated region
    $region38: #{tpu_custom_call.1} parent=1 // pred_check
      _
    $region39: #{tpu_custom_call.1} parent=1 // pred_check_branch
      %185 = sbr.rel (0) target = $region41
    $region40: #{tpu_custom_call.1} parent=1 // pred_region
      %s187 = ssub.s32 128, 128
      %188 = vsyncadd [#allocation5], %s187
      %s190 = sshll.u32 [#allocation11], 4
      %s191 = int_to_ptr.vmem [resolvable:$true] %s190
      %193 = dma.vmem_to_hbm [thread:$0]  %s191, 128, %s5, [#allocation5]
    $region41: #{tpu_custom_call.1} parent=1 // pred_fallthru
      _
    // Predicated region
    $region42: #{tpu_custom_call.1} parent=1 // pred_check
      _
    $region43: #{tpu_custom_call.1} parent=1 // pred_check_branch
      %195 = sbr.rel (0) target = $region45
    $region44: #{tpu_custom_call.1} parent=1 // pred_region
      %196 = dma.done [#allocation5], 128
    $region45: #{tpu_custom_call.1} parent=1 // pred_fallthru
      _
    %197 = vsyncpa [#allocation4], 1
    %198 = vsyncpa [#allocation5], 1
    %199 = vsyncpa [#allocation6], 1
    %200 = vsyncpa [#allocation9], 1

</llo_original>
